<compile_context>
chip_gen: v7x
topology: tpu7x:2x2x1
jax: 0.10.0
libtpu: 0.0.40
codegen_flags: <defaults>
</compile_context>

<pallas_src>
from typing import NamedTuple

import jax
import jax.numpy as jnp
from jax import lax
from jax.experimental import pallas as pl
from jax.experimental.pallas import tpu as pltpu

EPS = 1e-12


# ----------------------------------------------------------------------------
# Kernel body
# ----------------------------------------------------------------------------
def _cosine_kernel(x_ref, xinv_ref, wt_ref, wscale_ref, out_ref):
    # x_ref:      (B, INC)   resident input in MXU dtype (single-buffered)
    # xinv_ref:   (B, 1)     f32 row inverse-norms of x (precomputed, resident)
    # wt_ref:     (INC, tn)  pre-transposed weight class tile (pipelined)
    # wscale_ref: (1, tn)    per-class scale = rsqrt(max(||w||^2, EPS^2)) / temp
    # out_ref:    (B, tn)    lane-dense f32 output tile
    sim = jnp.dot(x_ref[...], wt_ref[...], preferred_element_type=jnp.float32)
    out_ref[...] = (sim * xinv_ref[...] * wscale_ref[...]).astype(out_ref.dtype)


# ----------------------------------------------------------------------------
# Parameter-prep-time precompute (do ONCE, reuse every forward call)
# ----------------------------------------------------------------------------
class PreparedCosineClassifier(NamedTuple):
    wt: jax.Array        # (INC, C_pad)  pre-transposed, zero-padded, MXU dtype
    w_scale: jax.Array   # (1, C_pad)    f32, rsqrt(max(||w||^2,eps^2))/temp, zero-padded
    num_class: int
    inc: int
    tn: int              # class tile width (multiple of 128)
    mxu_dtype: jnp.dtype


def _choose_class_tile(C, INC, itemsize, target_tile_bytes=2 << 20, max_tn=2048):
    """Pick a lane-dense class tile so each W^T tile DMA is ~target_tile_bytes."""
    nb = pl.cdiv(C, 128)  # number of 128-wide class blocks
    tn = (target_tile_bytes // max(1, INC * itemsize)) // 128 * 128
    tn = int(max(128, min(max_tn, tn)))
    # Keep >=2 class tiles whenever C > 128 so the "parallel" grid axis can be
    # sharded across both v7x TensorCores (roughly balanced halves).
    if nb >= 2:
        tn = min(tn, pl.cdiv(nb, 2) * 128)
    tn = min(tn, nb * 128)
    # Hard cap: double-buffered W^T tiles must stay well inside scoped VMEM.
    while tn > 128 and 2 * INC * tn * itemsize > (24 << 20):
        tn -= 128
    return int(tn)


def prepare_cosine_classifier(weight, temp=0.05, mxu_dtype=jnp.bfloat16,
                              target_tile_bytes=2 << 20):
    """Precompute W^T (padded, MXU dtype) and per-class scales. Call once."""
    C, INC = weight.shape
    itemsize = jnp.dtype(mxu_dtype).itemsize
    tn = _choose_class_tile(C, INC, itemsize, target_tile_bytes)
    C_pad = pl.cdiv(C, tn) * tn

    # Per-class inverse L2 norm folded with 1/temp (exact in f32).
    wf = weight.astype(jnp.float32)
    w_scale = lax.rsqrt(jnp.maximum(jnp.sum(wf * wf, axis=1), EPS * EPS)) / temp

    # Pre-transpose so the class axis is the lane-dense MXU N dim; zero-pad the
    # padded classes (both wt AND w_scale stay zero -> padded logits are exact 0
    # before the final [:, :C] slice).
    wt = weight.T.astype(mxu_dtype)
    if C_pad != C:
        wt = jnp.pad(wt, ((0, 0), (0, C_pad - C)))
        w_scale = jnp.pad(w_scale, (0, C_pad - C))
    w_scale = w_scale.reshape(1, C_pad).astype(jnp.float32)

    return PreparedCosineClassifier(wt=wt, w_scale=w_scale, num_class=int(C),
                                    inc=int(INC), tn=tn, mxu_dtype=mxu_dtype)


# ----------------------------------------------------------------------------
# Forward
# ----------------------------------------------------------------------------
def _forward_pallas(x_c, x_inv, prep, single_buffer_x):
    B, INC = x_c.shape
    tn = prep.tn
    C_pad = prep.wt.shape[1]
    n_tiles = C_pad // tn
    itemsize = jnp.dtype(prep.mxu_dtype).itemsize

    # Explicit VMEM budget (v5e default scoped VMEM is only 16 MiB).
    x_bufs = 1 if single_buffer_x else 2
    vmem_bytes = (2 * INC * tn * itemsize        # double-buffered W^T tiles
                  + x_bufs * B * INC * itemsize  # resident x
                  + x_bufs * B * 4               # resident x_inv
                  + 2 * tn * 4                   # w_scale tiles
                  + 2 * B * tn * 4)              # output tiles
    vmem_limit = int(min(max(vmem_bytes + (2 << 20), 16 << 20), 64 << 20))

    # Resident operands never change block index -> single buffer is enough.
    res_kwargs = dict(pipeline_mode=pl.Buffered(1)) if single_buffer_x else {}

    out = pl.pallas_call(
        _cosine_kernel,
        out_shape=jax.ShapeDtypeStruct((B, C_pad), jnp.float32),
        grid_spec=pltpu.PrefetchScalarGridSpec(
            num_scalar_prefetch=0,
            grid=(n_tiles,),
            in_specs=[
                pl.BlockSpec((B, INC), lambda j: (0, 0), **res_kwargs),  # x resident
                pl.BlockSpec((B, 1), lambda j: (0, 0), **res_kwargs),    # x_inv resident
                pl.BlockSpec((INC, tn), lambda j: (0, j)),               # W^T class tile
                pl.BlockSpec((1, tn), lambda j: (0, j)),                 # per-class scales
            ],
            out_specs=pl.BlockSpec((B, tn), lambda j: (0, j)),
        ),
        compiler_params=pltpu.CompilerParams(
            dimension_semantics=("parallel",),   # class tiles independent (v7x: 2 TCs)
            vmem_limit_bytes=vmem_limit,
        ),
    )(x_c, x_inv, prep.wt, prep.w_scale)
    return out[:, :prep.num_class]


def _forward_xla(x_c, x_inv, prep):
    # Fused fallback with the identical folded-normalization math.
    sim = jnp.dot(x_c, prep.wt, preferred_element_type=jnp.float32)
    return (sim * x_inv * prep.w_scale)[:, :prep.num_class]


def cosine_classifier_fwd(x, prep: PreparedCosineClassifier, use_pallas=None):
    """x: (B, INC) -> (B, num_class) float32 cosine logits / temp."""
    B, INC = x.shape
    assert INC == prep.inc

    # Hoisted once per call: row inverse L2 norm of x in f32 (exact), and the
    # MXU-dtype stream of x.
    xf = x.astype(jnp.float32)
    x_inv = lax.rsqrt(jnp.maximum(jnp.sum(xf * xf, axis=1, keepdims=True), EPS * EPS))
    x_c = x.astype(prep.mxu_dtype)

    if use_pallas is None:
        # Tiny problems: fixed Pallas dispatch overhead dominates -> fused XLA.
        # Huge resident x: would need a B grid axis -> fused XLA (see TODO above).
        x_bytes = B * INC * jnp.dtype(prep.mxu_dtype).itemsize
        use_pallas = (B * prep.wt.shape[1] * INC >= (1 << 22)) and (x_bytes <= (16 << 20))
    if not use_pallas:
        return _forward_xla(x_c, x_inv, prep)

    try:
        return _forward_pallas(x_c, x_inv, prep, single_buffer_x=True)
    except Exception:
        # Safety net: if this JAX build rejects pl.Buffered(1) on a pallas_call
        # BlockSpec, fall back to default double-buffering (previously-validated
        # configuration; costs one extra small x buffer).
        return _forward_pallas(x_c, x_inv, prep, single_buffer_x=False)


# ----------------------------------------------------------------------------
# Reference (pure JAX, mirrors the PyTorch forward)
# ----------------------------------------------------------------------------
def reference(x, weight, temp=0.05):
    x_n = x / jnp.maximum(jnp.linalg.norm(x, axis=1, keepdims=True), EPS)
    w_n = weight / jnp.maximum(jnp.linalg.norm(weight, axis=1, keepdims=True), EPS)
    return (x_n @ w_n.T) / temp


if __name__ == "__main__":
    # Small shapes consistent with the module: num_class=64, inc=256, batch=8.
    B, INC, C = 8, 256, 64
    temp = 0.05

    key = jax.random.PRNGKey(0)
    kx, kw = jax.random.split(key)
    x = jax.random.normal(kx, (B, INC), dtype=jnp.float32)
    weight = jax.random.normal(kw, (C, INC), dtype=jnp.float32) * 0.02  # fc weight (C, INC)

    ref = reference(x, weight, temp)

    # Parameter-prep-time precompute (done once, reused across forward calls).
    # 1) exact f32 streaming path (bit-tight check against the reference)
    prep_f32 = prepare_cosine_classifier(weight, temp=temp, mxu_dtype=jnp.float32)
    out_f32 = jax.block_until_ready(cosine_classifier_fwd(x, prep_f32, use_pallas=True))
    assert out_f32.shape == (B, C)
    assert jnp.allclose(out_f32, ref, atol=1e-3, rtol=1e-3), (
        f"f32 max abs err = {jnp.max(jnp.abs(out_f32 - ref))}"
    )

    # 2) default bf16-streaming path (halved W HBM traffic; f32 accumulation)
    prep_bf16 = prepare_cosine_classifier(weight, temp=temp, mxu_dtype=jnp.bfloat16)
    out_bf16 = jax.block_until_ready(cosine_classifier_fwd(x, prep_bf16, use_pallas=True))
    assert out_bf16.shape == (B, C)
    assert jnp.allclose(out_bf16, ref, atol=1e-1, rtol=2e-2), (
        f"bf16 max abs err = {jnp.max(jnp.abs(out_bf16 - ref))}"
    )

    print("KERNEL_OK")
</pallas_src>

<mosaic_0001>
module attributes {stable_mosaic.version = 11 : i64} {
  func.func @_cosine_kernel(%arg0: i32, %arg1: memref<8x256xf32, #tpu.memory_space<vmem>>, %arg2: memref<8x1xf32, #tpu.memory_space<vmem>>, %arg3: memref<256x128xf32, #tpu.memory_space<vmem>>, %arg4: memref<1x128xf32, #tpu.memory_space<vmem>>, %arg5: memref<8x128xf32, #tpu.memory_space<vmem>>) attributes {dimension_semantics = [#tpu.dimension_semantics<parallel>], iteration_bounds = array<i64: 1>, scalar_prefetch = 0 : i64, scratch_operands = 0 : i64, tpu.core_type = #tpu.core_type<tc>, window_params = [{pipeline_mode = #tpu.pipeline_mode<synchronous>, transform_indices = @transform_0, window_bounds = array<i64: 8, 256>}, {pipeline_mode = #tpu.pipeline_mode<synchronous>, transform_indices = @transform_1, window_bounds = array<i64: 8, 1>}, {transform_indices = @transform_2, window_bounds = array<i64: 256, 128>}, {transform_indices = @transform_3, window_bounds = array<i64: 1, 128>}, {transform_indices = @transform_4, window_bounds = array<i64: 8, 128>}]} {
    %c0 = arith.constant 0 : index
    %c0_0 = arith.constant 0 : index
    %0 = vector.load %arg1[%c0, %c0_0] : memref<8x256xf32, #tpu.memory_space<vmem>>, vector<8x256xf32>
    %c0_1 = arith.constant 0 : index
    %c0_2 = arith.constant 0 : index
    %1 = vector.load %arg3[%c0_1, %c0_2] : memref<256x128xf32, #tpu.memory_space<vmem>>, vector<256x128xf32>
    %cst = arith.constant dense<0.000000e+00> : vector<8x128xf32>
    %2 = tpu.matmul %0, %1, %cst {dimension_numbers = #tpu.dot_dimension_numbers<[1], [0], [0], [1], [0, 0, 1, 1], [], []>} : vector<8x256xf32>, vector<256x128xf32>, vector<8x128xf32> -> vector<8x128xf32>
    %c0_3 = arith.constant 0 : index
    %c0_4 = arith.constant 0 : index
    %3 = vector.load %arg2[%c0_3, %c0_4] : memref<8x1xf32, #tpu.memory_space<vmem>>, vector<8x1xf32>
    %4 = vector.broadcast %3 : vector<8x1xf32> to vector<8x128xf32>
    %5 = arith.mulf %2, %4 : vector<8x128xf32>
    %c0_5 = arith.constant 0 : index
    %c0_6 = arith.constant 0 : index
    %6 = vector.load %arg4[%c0_5, %c0_6] : memref<1x128xf32, #tpu.memory_space<vmem>>, vector<1x128xf32>
    %7 = vector.broadcast %6 : vector<1x128xf32> to vector<8x128xf32>
    %8 = arith.mulf %5, %7 : vector<8x128xf32>
    %c0_7 = arith.constant 0 : index
    %c0_8 = arith.constant 0 : index
    %9 = vector.load %arg5[%c0_7, %c0_8] : memref<8x128xf32, #tpu.memory_space<vmem>>, vector<8x128xf32>
    tpu.vector_store %arg5[%c0_7, %c0_8], %8 {strides = array<i32>} : memref<8x128xf32, #tpu.memory_space<vmem>>, vector<8x128xf32>,
    return
  }
  func.func @transform_0(%arg0: i32) -> (i32, i32) {
    %c0_i32 = arith.constant 0 : i32
    %c0_i32_0 = arith.constant 0 : i32
    %c0_i32_1 = arith.constant 0 : i32
    return %c0_i32, %c0_i32_0 : i32, i32
  }
  func.func @transform_1(%arg0: i32) -> (i32, i32) {
    %c0_i32 = arith.constant 0 : i32
    %c0_i32_0 = arith.constant 0 : i32
    %c0_i32_1 = arith.constant 0 : i32
    return %c0_i32, %c0_i32_0 : i32, i32
  }
  func.func @transform_2(%arg0: i32) -> (i32, i32) {
    %c0_i32 = arith.constant 0 : i32
    %c0_i32_0 = arith.constant 0 : i32
    return %c0_i32, %arg0 : i32, i32
  }
  func.func @transform_3(%arg0: i32) -> (i32, i32) {
    %c0_i32 = arith.constant 0 : i32
    %c0_i32_0 = arith.constant 0 : i32
    return %c0_i32, %arg0 : i32, i32
  }
  func.func @transform_4(%arg0: i32) -> (i32, i32) {
    %c0_i32 = arith.constant 0 : i32
    %c0_i32_0 = arith.constant 0 : i32
    return %c0_i32, %arg0 : i32, i32
  }
}

module attributes {stable_mosaic.version = 11 : i64} {
  func.func @_cosine_kernel(%arg0: i32, %arg1: memref<8x256xf32, #tpu.memory_space<vmem>>, %arg2: memref<8x1xf32, #tpu.memory_space<vmem>>, %arg3: memref<256x128xf32, #tpu.memory_space<vmem>>, %arg4: memref<1x128xf32, #tpu.memory_space<vmem>>, %arg5: memref<8x128xf32, #tpu.memory_space<vmem>>) attributes {dimension_semantics = [#tpu.dimension_semantics<parallel>], iteration_bounds = array<i64: 1>, scalar_prefetch = 0 : i64, scratch_operands = 0 : i64, tpu.core_type = #tpu.core_type<tc>, window_params = [{pipeline_mode = #tpu.pipeline_mode<synchronous>, transform_indices = @transform_0, window_bounds = array<i64: 8, 256>}, {pipeline_mode = #tpu.pipeline_mode<synchronous>, transform_indices = @transform_1, window_bounds = array<i64: 8, 1>}, {transform_indices = @transform_2, window_bounds = array<i64: 256, 128>}, {transform_indices = @transform_3, window_bounds = array<i64: 1, 128>}, {transform_indices = @transform_4, window_bounds = array<i64: 8, 128>}]} {
    %c0 = arith.constant 0 : index
    %c0_0 = arith.constant 0 : index
    %0 = vector.load %arg1[%c0, %c0_0] : memref<8x256xf32, #tpu.memory_space<vmem>>, vector<8x256xf32>
    %c0_1 = arith.constant 0 : index
    %c0_2 = arith.constant 0 : index
    %1 = vector.load %arg3[%c0_1, %c0_2] : memref<256x128xf32, #tpu.memory_space<vmem>>, vector<256x128xf32>
    %cst = arith.constant dense<0.000000e+00> : vector<8x128xf32>
    %2 = tpu.matmul %0, %1, %cst {dimension_numbers = #tpu.dot_dimension_numbers<[1], [0], [0], [1], [0, 0, 1, 1], [], []>} : vector<8x256xf32>, vector<256x128xf32>, vector<8x128xf32> -> vector<8x128xf32>
    %c0_3 = arith.constant 0 : index
    %c0_4 = arith.constant 0 : index
    %3 = vector.load %arg2[%c0_3, %c0_4] : memref<8x1xf32, #tpu.memory_space<vmem>>, vector<8x1xf32>
    %4 = vector.broadcast %3 : vector<8x1xf32> to vector<8x128xf32>
    %5 = arith.mulf %2, %4 : vector<8x128xf32>
    %c0_5 = arith.constant 0 : index
    %c0_6 = arith.constant 0 : index
    %6 = vector.load %arg4[%c0_5, %c0_6] : memref<1x128xf32, #tpu.memory_space<vmem>>, vector<1x128xf32>
    %7 = vector.broadcast %6 : vector<1x128xf32> to vector<8x128xf32>
    %8 = arith.mulf %5, %7 : vector<8x128xf32>
    %c0_7 = arith.constant 0 : index
    %c0_8 = arith.constant 0 : index
    %9 = vector.load %arg5[%c0_7, %c0_8] : memref<8x128xf32, #tpu.memory_space<vmem>>, vector<8x128xf32>
    tpu.vector_store %arg5[%c0_7, %c0_8], %8 {strides = array<i32>} : memref<8x128xf32, #tpu.memory_space<vmem>>, vector<8x128xf32>,
    return
  }
  func.func @transform_0(%arg0: i32) -> (i32, i32) {
    %c0_i32 = arith.constant 0 : i32
    %c0_i32_0 = arith.constant 0 : i32
    %c0_i32_1 = arith.constant 0 : i32
    return %c0_i32, %c0_i32_0 : i32, i32
  }
  func.func @transform_1(%arg0: i32) -> (i32, i32) {
    %c0_i32 = arith.constant 0 : i32
    %c0_i32_0 = arith.constant 0 : i32
    %c0_i32_1 = arith.constant 0 : i32
    return %c0_i32, %c0_i32_0 : i32, i32
  }
  func.func @transform_2(%arg0: i32) -> (i32, i32) {
    %c0_i32 = arith.constant 0 : i32
    %c0_i32_0 = arith.constant 0 : i32
    return %c0_i32, %arg0 : i32, i32
  }
  func.func @transform_3(%arg0: i32) -> (i32, i32) {
    %c0_i32 = arith.constant 0 : i32
    %c0_i32_0 = arith.constant 0 : i32
    return %c0_i32, %arg0 : i32, i32
  }
  func.func @transform_4(%arg0: i32) -> (i32, i32) {
    %c0_i32 = arith.constant 0 : i32
    %c0_i32_0 = arith.constant 0 : i32
    return %c0_i32, %arg0 : i32, i32
  }
}

</mosaic_0001>

<llo_original>
// kernel: tpu_custom_call.1
$region0: #{tpu_custom_call.1}
  #allocation0 [shape = 'u32[]', space=smem, size = 0x4, offset = 0x4, fixed_abs, tag = 'smem constant byte address 0x4 - core index']
  #allocation1 [shape = 'u32[144,128]{1,0:T(1,128)}', space=vmem, size = 0x12000, scoped, tag = 'internal scratch']
  %s0 = inlined_call_operand.hbm [shape: f32[8,256], index: 0, kind: input, shape index: {}]
  %s1 = inlined_call_operand.vmem [shape: f32[8,1], index: 1, kind: input, shape index: {}]
  %s2 = inlined_call_operand.hbm [shape: f32[256,128], index: 2, kind: input, shape index: {}]
  %s3 = inlined_call_operand.vmem [shape: f32[1,128], index: 3, kind: input, shape index: {}]
  %s4 = inlined_call_operand.hbm [shape: f32[8,128], index: 4, kind: output, shape index: {}]
  %s5 = sld [smem:[#allocation0]]
  $region34: #{tpu_custom_call.1} parent=0
    _
  %s7 = ssub.s32 1, %s5
  %s8 = scalar_select 0, %s7, %s5
  $region1: #{tpu_custom_call.1} parent=0
    #allocation2 [shape = 'u8[8192]{0}', space=vmem, size = 0x2000, scoped, tag = 'input window, operand 0, single buffered']
    #allocation3 [shape = 's32[1]{0}', space=sflag, size = 0x4, scoped, tag = 'scoped memory for tpu_custom_call.1']
    #allocation4 [shape = 's32[1]{0}', space=sflag, size = 0x4, scoped, tag = 'scoped memory for tpu_custom_call.1']
    #allocation5 [shape = 'u8[131072]{0}', space=vmem, size = 0x20000, scoped, tag = 'input window, operand 2, single buffered']
    #allocation6 [shape = 's32[1]{0}', space=sflag, size = 0x4, scoped, tag = 'scoped memory for tpu_custom_call.1']
    #allocation7 [shape = 'u8[4096]{0}', space=vmem, size = 0x1000, scoped, tag = 'output window, operand 0, single buffered']
    %9 = vsyncpa [#allocation3], 0
    %10 = vsyncpa [#allocation6], 0
    %11 = vsyncpa [#allocation4], 0
    // Predicated region
    $region2: #{tpu_custom_call.1} parent=1 // pred_check
      _
    $region3: #{tpu_custom_call.1} parent=1 // pred_check_branch
      %13 = sbr.rel (0) target = $region5
    $region4: #{tpu_custom_call.1} parent=1 // pred_region
      %s15 = ssub.s32 256, 256
      %16 = vsyncadd [#allocation3], %s15
      %s18 = sshll.u32 [#allocation2], 4
      %s19 = int_to_ptr.vmem [resolvable:$true] %s18
      %21 = dma.hbm_to_vmem [thread:$0]  %s0, 256, %s19, [#allocation3]
    $region5: #{tpu_custom_call.1} parent=1 // pred_fallthru
      _
    // Predicated region
    $region6: #{tpu_custom_call.1} parent=1 // pred_check
      _
    $region7: #{tpu_custom_call.1} parent=1 // pred_check_branch
      %23 = sbr.rel (0) target = $region9
    $region8: #{tpu_custom_call.1} parent=1 // pred_region
      _
    $region9: #{tpu_custom_call.1} parent=1 // pred_fallthru
      _
    // Predicated region
    $region10: #{tpu_custom_call.1} parent=1 // pred_check
      _
    $region11: #{tpu_custom_call.1} parent=1 // pred_check_branch
      %25 = sbr.rel (0) target = $region13
    $region12: #{tpu_custom_call.1} parent=1 // pred_region
      %s27 = ssub.s32 4096, 4096
      %28 = vsyncadd [#allocation6], %s27
      %s29 = sshll.u32 [#allocation5], 4
      %s30 = int_to_ptr.vmem [resolvable:$true] %s29
      %35 = dma.hbm_to_vmem [thread:$0]  %s2, 4096, %s30, [#allocation6], 128, 128, 8
    $region13: #{tpu_custom_call.1} parent=1 // pred_fallthru
      _
    // Predicated region
    $region14: #{tpu_custom_call.1} parent=1 // pred_check
      _
    $region15: #{tpu_custom_call.1} parent=1 // pred_check_branch
      %37 = sbr.rel (0) target = $region17
    $region16: #{tpu_custom_call.1} parent=1 // pred_region
      _
    $region17: #{tpu_custom_call.1} parent=1 // pred_fallthru
      _
    // Predicated region
    $region18: #{tpu_custom_call.1} parent=1 // pred_check
      _
    $region19: #{tpu_custom_call.1} parent=1 // pred_check_branch
      %39 = sbr.rel (0) target = $region21
    $region20: #{tpu_custom_call.1} parent=1 // pred_region
      %40 = dma.done [#allocation3], 256
    $region21: #{tpu_custom_call.1} parent=1 // pred_fallthru
      _
    // Predicated region
    $region22: #{tpu_custom_call.1} parent=1 // pred_check
      _
    $region23: #{tpu_custom_call.1} parent=1 // pred_check_branch
      %42 = sbr.rel (0) target = $region25
    $region24: #{tpu_custom_call.1} parent=1 // pred_region
      %43 = dma.done [#allocation6], 4096
    $region25: #{tpu_custom_call.1} parent=1 // pred_fallthru
      _
    %v44 = vld [vmem:[#allocation2] sm:$0xff]
    %v45 = vld [vmem:[#allocation2 + $0x8] sm:$0xff]
    %v46 = vld [vmem:[#allocation5] sm:$0xff]
    %v47 = vld [vmem:[#allocation5 + $0x8] sm:$0xff]
    %v48 = vld [vmem:[#allocation5 + $0x10] sm:$0xff]
    %v49 = vld [vmem:[#allocation5 + $0x18] sm:$0xff]
    %v50 = vld [vmem:[#allocation5 + $0x20] sm:$0xff]
    %v51 = vld [vmem:[#allocation5 + $0x28] sm:$0xff]
    %v52 = vld [vmem:[#allocation5 + $0x30] sm:$0xff]
    %v53 = vld [vmem:[#allocation5 + $0x38] sm:$0xff]
    %v54 = vld [vmem:[#allocation5 + $0x40] sm:$0xff]
    %v55 = vld [vmem:[#allocation5 + $0x48] sm:$0xff]
    %v56 = vld [vmem:[#allocation5 + $0x50] sm:$0xff]
    %v57 = vld [vmem:[#allocation5 + $0x58] sm:$0xff]
    %v58 = vld [vmem:[#allocation5 + $0x60] sm:$0xff]
    %v59 = vld [vmem:[#allocation5 + $0x68] sm:$0xff]
    %v60 = vld [vmem:[#allocation5 + $0x70] sm:$0xff]
    %v61 = vld [vmem:[#allocation5 + $0x78] sm:$0xff]
    %v62 = vld [vmem:[#allocation5 + $0x80] sm:$0xff]
    %v63 = vld [vmem:[#allocation5 + $0x88] sm:$0xff]
    %v64 = vld [vmem:[#allocation5 + $0x90] sm:$0xff]
    %v65 = vld [vmem:[#allocation5 + $0x98] sm:$0xff]
    %v66 = vld [vmem:[#allocation5 + $0xa0] sm:$0xff]
    %v67 = vld [vmem:[#allocation5 + $0xa8] sm:$0xff]
    %v68 = vld [vmem:[#allocation5 + $0xb0] sm:$0xff]
    %v69 = vld [vmem:[#allocation5 + $0xb8] sm:$0xff]
    %v70 = vld [vmem:[#allocation5 + $0xc0] sm:$0xff]
    %v71 = vld [vmem:[#allocation5 + $0xc8] sm:$0xff]
    %v72 = vld [vmem:[#allocation5 + $0xd0] sm:$0xff]
    %v73 = vld [vmem:[#allocation5 + $0xd8] sm:$0xff]
    %v74 = vld [vmem:[#allocation5 + $0xe0] sm:$0xff]
    %v75 = vld [vmem:[#allocation5 + $0xe8] sm:$0xff]
    %v76 = vld [vmem:[#allocation5 + $0xf0] sm:$0xff]
    %v77 = vld [vmem:[#allocation5 + $0xf8] sm:$0xff]
    %78 = vmatprep.subr.mxu0 0.0
    %79 = vmatpush1.msra.mxu0 %v46
    %80 = vmatprep.subr.mxu0 0.0
    %81 = vmatpush1.msra.mxu0 %v47
    %82 = vmatprep.subr.mxu0 0.0
    %83 = vmatpush1.msra.mxu0 %v48
    %84 = vmatprep.subr.mxu0 0.0
    %85 = vmatpush1.msra.mxu0 %v49
    %86 = vmatprep.subr.mxu0 0.0
    %87 = vmatpush1.msra.mxu0 %v50
    %88 = vmatprep.subr.mxu0 0.0
    %89 = vmatpush1.msra.mxu0 %v51
    %90 = vmatprep.subr.mxu0 0.0
    %91 = vmatpush1.msra.mxu0 %v52
    %92 = vmatprep.subr.mxu0 0.0
    %93 = vmatpush1.msra.mxu0 %v53
    %94 = vmatprep.subr.mxu0 0.0
    %95 = vmatpush1.msra.mxu0 %v54
    %96 = vmatprep.subr.mxu0 0.0
    %97 = vmatpush1.msra.mxu0 %v55
    %98 = vmatprep.subr.mxu0 0.0
    %99 = vmatpush1.msra.mxu0 %v56
    %100 = vmatprep.subr.mxu0 0.0
    %101 = vmatpush1.msra.mxu0 %v57
    %102 = vmatprep.subr.mxu0 0.0
    %103 = vmatpush1.msra.mxu0 %v58
    %104 = vmatprep.subr.mxu0 0.0
    %105 = vmatpush1.msra.mxu0 %v59
    %106 = vmatprep.subr.mxu0 0.0
    %107 = vmatpush1.msra.mxu0 %v60
    %108 = vmatprep.subr.mxu0 0.0
    %109 = vmatpush1.msra.mxu0 %v61
    %110 = vmatprep.subr.mxu0 0.0
    %111 = vmatpush1.msra.mxu0 %v62
    %112 = vmatprep.subr.mxu0 0.0
    %113 = vmatpush1.msra.mxu0 %v63
    %114 = vmatprep.subr.mxu0 0.0
    %115 = vmatpush1.msra.mxu0 %v64
    %116 = vmatprep.subr.mxu0 0.0
    %117 = vmatpush1.msra.mxu0 %v65
    %118 = vmatprep.subr.mxu0 0.0
    %119 = vmatpush1.msra.mxu0 %v66
    %120 = vmatprep.subr.mxu0 0.0
    %121 = vmatpush1.msra.mxu0 %v67
    %122 = vmatprep.subr.mxu0 0.0
    %123 = vmatpush1.msra.mxu0 %v68
    %124 = vmatprep.subr.mxu0 0.0
    %125 = vmatpush1.msra.mxu0 %v69
    %126 = vmatprep.subr.mxu0 0.0
    %127 = vmatpush1.msra.mxu0 %v70
    %128 = vmatprep.subr.mxu0 0.0
    %129 = vmatpush1.msra.mxu0 %v71
    %130 = vmatprep.subr.mxu0 0.0
    %131 = vmatpush1.msra.mxu0 %v72
    %132 = vmatprep.subr.mxu0 0.0
    %133 = vmatpush1.msra.mxu0 %v73
    %134 = vmatprep.subr.mxu0 0.0
    %135 = vmatpush1.msra.mxu0 %v74
    %136 = vmatprep.subr.mxu0 0.0
    %137 = vmatpush1.msra.mxu0 %v75
    %138 = vmatprep.subr.mxu0 0.0
    %139 = vmatpush1.msra.mxu0 %v76
    %140 = vmatprep.subr.mxu0 0.0
    %141 = vmatpush1.msra.mxu0 %v77
    %142 = vmatprep.mubr.f32.mxu0 %v45
    %143 = vmatmul.mubr.f32.gmra.mrb[0].mxu0 %v44
    %v144 = vpop.f32.mrb[0].mxu0
    %v145 = vadd.f32 0.0, %v144
    %v146 = vpop.f32.mrb[0].mxu0
    %147 = vdwg.mxu0
    %v148 = vld [vmem:[%s1] sm:$0xff]
    %150 = vset.pattern.permute.xlu0 0
    %151 = vperm.xlu0 %150, %v148
    %v152 = vpop.permute.xlu0 %151
    %v154 = vmul.f32 %v145, %v152
    %v155 = vld [vmem:[%s3] sm:$0x1]
    %v157 = vlaneseq
    %v158 = vshrl.u32 %v157, 7
    %v159 = vsub.s32 0, %v158
    %v160 = vrot.slane %v155, %v159
    %v162 = vmul.f32 %v154, %v160
    %163 = vst [vmem:[#allocation7] sm:$0xff] %v162
    // Predicated region
    $region26: #{tpu_custom_call.1} parent=1 // pred_check
      _
    $region27: #{tpu_custom_call.1} parent=1 // pred_check_branch
      %165 = sbr.rel (0) target = $region29
    $region28: #{tpu_custom_call.1} parent=1 // pred_region
      %s167 = ssub.s32 128, 128
      %168 = vsyncadd [#allocation4], %s167
      %s170 = sshll.u32 [#allocation7], 4
      %s171 = int_to_ptr.vmem [resolvable:$true] %s170
      %173 = dma.vmem_to_hbm [thread:$0]  %s171, 128, %s4, [#allocation4]
    $region29: #{tpu_custom_call.1} parent=1 // pred_fallthru
      _
    // Predicated region
    $region30: #{tpu_custom_call.1} parent=1 // pred_check
      _
    $region31: #{tpu_custom_call.1} parent=1 // pred_check_branch
      %175 = sbr.rel (0) target = $region33
    $region32: #{tpu_custom_call.1} parent=1 // pred_region
      %176 = dma.done [#allocation4], 128
    $region33: #{tpu_custom_call.1} parent=1 // pred_fallthru
      _
    %177 = vsyncpa [#allocation3], 1
    %178 = vsyncpa [#allocation6], 1
    %179 = vsyncpa [#allocation4], 1

// kernel: tpu_custom_call.1
$region0: #{tpu_custom_call.1}
  #allocation0 [shape = 'u32[]', space=smem, size = 0x4, offset = 0x4, fixed_abs, tag = 'smem constant byte address 0x4 - core index']
  #allocation1 [shape = 'u32[144,128]{1,0:T(1,128)}', space=vmem, size = 0x12000, scoped, tag = 'internal scratch']
  %s0 = inlined_call_operand.hbm [shape: f32[8,256], index: 0, kind: input, shape index: {}]
  %s1 = inlined_call_operand.vmem [shape: f32[8,1], index: 1, kind: input, shape index: {}]
  %s2 = inlined_call_operand.hbm [shape: f32[256,128], index: 2, kind: input, shape index: {}]
  %s3 = inlined_call_operand.vmem [shape: f32[1,128], index: 3, kind: input, shape index: {}]
  %s4 = inlined_call_operand.hbm [shape: f32[8,128], index: 4, kind: output, shape index: {}]
  %s5 = sld [smem:[#allocation0]]
  $region34: #{tpu_custom_call.1} parent=0
    _
  %s7 = ssub.s32 1, %s5
  %s8 = scalar_select 0, %s7, %s5
  $region1: #{tpu_custom_call.1} parent=0
    #allocation2 [shape = 'u8[8192]{0}', space=vmem, size = 0x2000, scoped, tag = 'input window, operand 0, single buffered']
    #allocation3 [shape = 's32[1]{0}', space=sflag, size = 0x4, scoped, tag = 'scoped memory for tpu_custom_call.1']
    #allocation4 [shape = 's32[1]{0}', space=sflag, size = 0x4, scoped, tag = 'scoped memory for tpu_custom_call.1']
    #allocation5 [shape = 'u8[131072]{0}', space=vmem, size = 0x20000, scoped, tag = 'input window, operand 2, single buffered']
    #allocation6 [shape = 's32[1]{0}', space=sflag, size = 0x4, scoped, tag = 'scoped memory for tpu_custom_call.1']
    #allocation7 [shape = 'u8[4096]{0}', space=vmem, size = 0x1000, scoped, tag = 'output window, operand 0, single buffered']
    %9 = vsyncpa [#allocation3], 0
    %10 = vsyncpa [#allocation6], 0
    %11 = vsyncpa [#allocation4], 0
    // Predicated region
    $region2: #{tpu_custom_call.1} parent=1 // pred_check
      _
    $region3: #{tpu_custom_call.1} parent=1 // pred_check_branch
      %13 = sbr.rel (0) target = $region5
    $region4: #{tpu_custom_call.1} parent=1 // pred_region
      %s15 = ssub.s32 256, 256
      %16 = vsyncadd [#allocation3], %s15
      %s18 = sshll.u32 [#allocation2], 4
      %s19 = int_to_ptr.vmem [resolvable:$true] %s18
      %21 = dma.hbm_to_vmem [thread:$0]  %s0, 256, %s19, [#allocation3]
    $region5: #{tpu_custom_call.1} parent=1 // pred_fallthru
      _
    // Predicated region
    $region6: #{tpu_custom_call.1} parent=1 // pred_check
      _
    $region7: #{tpu_custom_call.1} parent=1 // pred_check_branch
      %23 = sbr.rel (0) target = $region9
    $region8: #{tpu_custom_call.1} parent=1 // pred_region
      _
    $region9: #{tpu_custom_call.1} parent=1 // pred_fallthru
      _
    // Predicated region
    $region10: #{tpu_custom_call.1} parent=1 // pred_check
      _
    $region11: #{tpu_custom_call.1} parent=1 // pred_check_branch
      %25 = sbr.rel (0) target = $region13
    $region12: #{tpu_custom_call.1} parent=1 // pred_region
      %s27 = ssub.s32 4096, 4096
      %28 = vsyncadd [#allocation6], %s27
      %s29 = sshll.u32 [#allocation5], 4
      %s30 = int_to_ptr.vmem [resolvable:$true] %s29
      %35 = dma.hbm_to_vmem [thread:$0]  %s2, 4096, %s30, [#allocation6], 128, 128, 8
    $region13: #{tpu_custom_call.1} parent=1 // pred_fallthru
      _
    // Predicated region
    $region14: #{tpu_custom_call.1} parent=1 // pred_check
      _
    $region15: #{tpu_custom_call.1} parent=1 // pred_check_branch
      %37 = sbr.rel (0) target = $region17
    $region16: #{tpu_custom_call.1} parent=1 // pred_region
      _
    $region17: #{tpu_custom_call.1} parent=1 // pred_fallthru
      _
    // Predicated region
    $region18: #{tpu_custom_call.1} parent=1 // pred_check
      _
    $region19: #{tpu_custom_call.1} parent=1 // pred_check_branch
      %39 = sbr.rel (0) target = $region21
    $region20: #{tpu_custom_call.1} parent=1 // pred_region
      %40 = dma.done [#allocation3], 256
    $region21: #{tpu_custom_call.1} parent=1 // pred_fallthru
      _
    // Predicated region
    $region22: #{tpu_custom_call.1} parent=1 // pred_check
      _
    $region23: #{tpu_custom_call.1} parent=1 // pred_check_branch
      %42 = sbr.rel (0) target = $region25
    $region24: #{tpu_custom_call.1} parent=1 // pred_region
      %43 = dma.done [#allocation6], 4096
    $region25: #{tpu_custom_call.1} parent=1 // pred_fallthru
      _
    %v44 = vld [vmem:[#allocation2] sm:$0xff]
    %v45 = vld [vmem:[#allocation2 + $0x8] sm:$0xff]
    %v46 = vld [vmem:[#allocation5] sm:$0xff]
    %v47 = vld [vmem:[#allocation5 + $0x8] sm:$0xff]
    %v48 = vld [vmem:[#allocation5 + $0x10] sm:$0xff]
    %v49 = vld [vmem:[#allocation5 + $0x18] sm:$0xff]
    %v50 = vld [vmem:[#allocation5 + $0x20] sm:$0xff]
    %v51 = vld [vmem:[#allocation5 + $0x28] sm:$0xff]
    %v52 = vld [vmem:[#allocation5 + $0x30] sm:$0xff]
    %v53 = vld [vmem:[#allocation5 + $0x38] sm:$0xff]
    %v54 = vld [vmem:[#allocation5 + $0x40] sm:$0xff]
    %v55 = vld [vmem:[#allocation5 + $0x48] sm:$0xff]
    %v56 = vld [vmem:[#allocation5 + $0x50] sm:$0xff]
    %v57 = vld [vmem:[#allocation5 + $0x58] sm:$0xff]
    %v58 = vld [vmem:[#allocation5 + $0x60] sm:$0xff]
    %v59 = vld [vmem:[#allocation5 + $0x68] sm:$0xff]
    %v60 = vld [vmem:[#allocation5 + $0x70] sm:$0xff]
    %v61 = vld [vmem:[#allocation5 + $0x78] sm:$0xff]
    %v62 = vld [vmem:[#allocation5 + $0x80] sm:$0xff]
    %v63 = vld [vmem:[#allocation5 + $0x88] sm:$0xff]
    %v64 = vld [vmem:[#allocation5 + $0x90] sm:$0xff]
    %v65 = vld [vmem:[#allocation5 + $0x98] sm:$0xff]
    %v66 = vld [vmem:[#allocation5 + $0xa0] sm:$0xff]
    %v67 = vld [vmem:[#allocation5 + $0xa8] sm:$0xff]
    %v68 = vld [vmem:[#allocation5 + $0xb0] sm:$0xff]
    %v69 = vld [vmem:[#allocation5 + $0xb8] sm:$0xff]
    %v70 = vld [vmem:[#allocation5 + $0xc0] sm:$0xff]
    %v71 = vld [vmem:[#allocation5 + $0xc8] sm:$0xff]
    %v72 = vld [vmem:[#allocation5 + $0xd0] sm:$0xff]
    %v73 = vld [vmem:[#allocation5 + $0xd8] sm:$0xff]
    %v74 = vld [vmem:[#allocation5 + $0xe0] sm:$0xff]
    %v75 = vld [vmem:[#allocation5 + $0xe8] sm:$0xff]
    %v76 = vld [vmem:[#allocation5 + $0xf0] sm:$0xff]
    %v77 = vld [vmem:[#allocation5 + $0xf8] sm:$0xff]
    %78 = vmatprep.subr.mxu0 0.0
    %79 = vmatpush1.msra.mxu0 %v46
    %80 = vmatprep.subr.mxu0 0.0
    %81 = vmatpush1.msra.mxu0 %v47
    %82 = vmatprep.subr.mxu0 0.0
    %83 = vmatpush1.msra.mxu0 %v48
    %84 = vmatprep.subr.mxu0 0.0
    %85 = vmatpush1.msra.mxu0 %v49
    %86 = vmatprep.subr.mxu0 0.0
    %87 = vmatpush1.msra.mxu0 %v50
    %88 = vmatprep.subr.mxu0 0.0
    %89 = vmatpush1.msra.mxu0 %v51
    %90 = vmatprep.subr.mxu0 0.0
    %91 = vmatpush1.msra.mxu0 %v52
    %92 = vmatprep.subr.mxu0 0.0
    %93 = vmatpush1.msra.mxu0 %v53
    %94 = vmatprep.subr.mxu0 0.0
    %95 = vmatpush1.msra.mxu0 %v54
    %96 = vmatprep.subr.mxu0 0.0
    %97 = vmatpush1.msra.mxu0 %v55
    %98 = vmatprep.subr.mxu0 0.0
    %99 = vmatpush1.msra.mxu0 %v56
    %100 = vmatprep.subr.mxu0 0.0
    %101 = vmatpush1.msra.mxu0 %v57
    %102 = vmatprep.subr.mxu0 0.0
    %103 = vmatpush1.msra.mxu0 %v58
    %104 = vmatprep.subr.mxu0 0.0
    %105 = vmatpush1.msra.mxu0 %v59
    %106 = vmatprep.subr.mxu0 0.0
    %107 = vmatpush1.msra.mxu0 %v60
    %108 = vmatprep.subr.mxu0 0.0
    %109 = vmatpush1.msra.mxu0 %v61
    %110 = vmatprep.subr.mxu0 0.0
    %111 = vmatpush1.msra.mxu0 %v62
    %112 = vmatprep.subr.mxu0 0.0
    %113 = vmatpush1.msra.mxu0 %v63
    %114 = vmatprep.subr.mxu0 0.0
    %115 = vmatpush1.msra.mxu0 %v64
    %116 = vmatprep.subr.mxu0 0.0
    %117 = vmatpush1.msra.mxu0 %v65
    %118 = vmatprep.subr.mxu0 0.0
    %119 = vmatpush1.msra.mxu0 %v66
    %120 = vmatprep.subr.mxu0 0.0
    %121 = vmatpush1.msra.mxu0 %v67
    %122 = vmatprep.subr.mxu0 0.0
    %123 = vmatpush1.msra.mxu0 %v68
    %124 = vmatprep.subr.mxu0 0.0
    %125 = vmatpush1.msra.mxu0 %v69
    %126 = vmatprep.subr.mxu0 0.0
    %127 = vmatpush1.msra.mxu0 %v70
    %128 = vmatprep.subr.mxu0 0.0
    %129 = vmatpush1.msra.mxu0 %v71
    %130 = vmatprep.subr.mxu0 0.0
    %131 = vmatpush1.msra.mxu0 %v72
    %132 = vmatprep.subr.mxu0 0.0
    %133 = vmatpush1.msra.mxu0 %v73
    %134 = vmatprep.subr.mxu0 0.0
    %135 = vmatpush1.msra.mxu0 %v74
    %136 = vmatprep.subr.mxu0 0.0
    %137 = vmatpush1.msra.mxu0 %v75
    %138 = vmatprep.subr.mxu0 0.0
    %139 = vmatpush1.msra.mxu0 %v76
    %140 = vmatprep.subr.mxu0 0.0
    %141 = vmatpush1.msra.mxu0 %v77
    %142 = vmatprep.mubr.f32.mxu0 %v45
    %143 = vmatmul.mubr.f32.gmra.mrb[0].mxu0 %v44
    %v144 = vpop.f32.mrb[0].mxu0
    %v145 = vadd.f32 0.0, %v144
    %v146 = vpop.f32.mrb[0].mxu0
    %147 = vdwg.mxu0
    %v148 = vld [vmem:[%s1] sm:$0xff]
    %150 = vset.pattern.permute.xlu0 0
    %151 = vperm.xlu0 %150, %v148
    %v152 = vpop.permute.xlu0 %151
    %v154 = vmul.f32 %v145, %v152
    %v155 = vld [vmem:[%s3] sm:$0x1]
    %v157 = vlaneseq
    %v158 = vshrl.u32 %v157, 7
    %v159 = vsub.s32 0, %v158
    %v160 = vrot.slane %v155, %v159
    %v162 = vmul.f32 %v154, %v160
    %163 = vst [vmem:[#allocation7] sm:$0xff] %v162
    // Predicated region
    $region26: #{tpu_custom_call.1} parent=1 // pred_check
      _
    $region27: #{tpu_custom_call.1} parent=1 // pred_check_branch
      %165 = sbr.rel (0) target = $region29
    $region28: #{tpu_custom_call.1} parent=1 // pred_region
      %s167 = ssub.s32 128, 128
      %168 = vsyncadd [#allocation4], %s167
      %s170 = sshll.u32 [#allocation7], 4
      %s171 = int_to_ptr.vmem [resolvable:$true] %s170
      %173 = dma.vmem_to_hbm [thread:$0]  %s171, 128, %s4, [#allocation4]
    $region29: #{tpu_custom_call.1} parent=1 // pred_fallthru
      _
    // Predicated region
    $region30: #{tpu_custom_call.1} parent=1 // pred_check
      _
    $region31: #{tpu_custom_call.1} parent=1 // pred_check_branch
      %175 = sbr.rel (0) target = $region33
    $region32: #{tpu_custom_call.1} parent=1 // pred_region
      %176 = dma.done [#allocation4], 128
    $region33: #{tpu_custom_call.1} parent=1 // pred_fallthru
      _
    %177 = vsyncpa [#allocation3], 1
    %178 = vsyncpa [#allocation6], 1
    %179 = vsyncpa [#allocation4], 1

</llo_original>
